<compile_context>
chip_gen: v7x
topology: tpu7x:2x2x1
jax: 0.10.0
libtpu: 0.0.40
codegen_flags: <defaults>
</compile_context>

<pallas_src>
import jax
import jax.numpy as jnp
from jax.experimental import pallas as pl
from jax.experimental.pallas import tpu as pltpu


def _pick_tile(dim, candidates):
    """Largest candidate that evenly divides `dim`, else the full dim."""
    for t in candidates:
        if t <= dim and dim % t == 0:
            return t
    return dim


# ---------------------------------------------------------------------------
# Pallas kernel 1: one GCNLayer application (norm='both', weight, bias) with
# the degree norms pre-folded into A':
#   acc  = sum_k A'[i, k] @ feat[k]        (tiled message passing, MXU, bf16)
#   out  = acc @ W + bias                  (epilogue, last k step only, f32)
# ---------------------------------------------------------------------------
def _gcn_layer_kernel(a_ref, feat_ref, w_ref, bias_ref, out_ref, acc_ref):
    k = pl.program_id(1)

    @pl.when(k == 0)
    def _():
        acc_ref[...] = jnp.zeros_like(acc_ref)

    # (tm, tk) bf16 @ (tk, D) bf16 -> f32 accumulate on the MXU.
    acc_ref[...] += jnp.dot(a_ref[...], feat_ref[...],
                            preferred_element_type=jnp.float32)

    @pl.when(k == pl.num_programs(1) - 1)
    def _():
        out_ref[...] = (
            jnp.dot(acc_ref[...], w_ref[...], preferred_element_type=jnp.float32)
            + bias_ref[...]
        )


def gcn_layer(A_hat, feat, W, bias, *, tm=None, tk=None):
    """A_hat: (M, M) bf16 pre-scaled adjacency; feat: (M, D) bf16; W,bias f32."""
    M, D = feat.shape
    if tm is None:
        tm = _pick_tile(M, (512, 256, 128, 64, 32, 16, 8))   # sublane-aligned
    if tk is None:
        tk = _pick_tile(M, (512, 256, 128))                  # lane dim: x128 or full
    grid = (M // tm, M // tk)

    return pl.pallas_call(
        _gcn_layer_kernel,
        out_shape=jax.ShapeDtypeStruct((M, D), jnp.float32),
        grid=grid,
        in_specs=[
            pl.BlockSpec((tm, tk), lambda i, k: (i, k)),    # A' tile (streamed)
            pl.BlockSpec((tk, D), lambda i, k: (k, 0)),     # feat tile
            pl.BlockSpec((D, D), lambda i, k: (0, 0)),      # W resident
            pl.BlockSpec((1, D), lambda i, k: (0, 0)),      # bias resident
        ],
        out_specs=pl.BlockSpec((tm, D), lambda i, k: (i, 0)),
        scratch_shapes=[pltpu.VMEM((tm, D), jnp.float32)],
        compiler_params=pltpu.CompilerParams(
            dimension_semantics=("parallel", "arbitrary"),
            vmem_limit_bytes=48 * 1024 * 1024,  # safe on v7x (64 MiB) and v5e/v6e
        ),
    )(A_hat, feat, W, bias)


# ---------------------------------------------------------------------------
# Pallas kernel 2: 1x1 Conv2d (NCHW) == per-batch channel matmul, tiled over
# the flattened spatial (lane) axis S.
#   out[b, co, s] = sum_ci Wc[co, ci] * h[b, ci, s] + bc[co]
# ---------------------------------------------------------------------------
def _conv1x1_kernel(h_ref, w_ref, b_ref, out_ref):
    # h_ref: (1, Cin, tS), w_ref: (Cout, Cin), b_ref: (Cout, 1), out: (1, Cout, tS)
    out_ref[0] = (
        jnp.dot(w_ref[...], h_ref[0], preferred_element_type=jnp.float32)
        + b_ref[...]
    )


def conv1x1(h, Wc, bc, *, ts=None):
    B, Cin, S = h.shape
    Cout = Wc.shape[0]
    if ts is None:
        ts = _pick_tile(S, (2048, 1024, 512, 256, 128))
    grid = (B, S // ts)

    return pl.pallas_call(
        _conv1x1_kernel,
        out_shape=jax.ShapeDtypeStruct((B, Cout, S), jnp.float32),
        grid=grid,
        in_specs=[
            pl.BlockSpec((1, Cin, ts), lambda b, s: (b, 0, s)),
            pl.BlockSpec((Cout, Cin), lambda b, s: (0, 0)),
            pl.BlockSpec((Cout, 1), lambda b, s: (0, 0)),
        ],
        out_specs=pl.BlockSpec((1, Cout, ts), lambda b, s: (b, 0, s)),
        compiler_params=pltpu.CompilerParams(
            dimension_semantics=("parallel", "parallel"),
        ),
    )(h, Wc, bc)


# ---------------------------------------------------------------------------
# Full GCN forward (glue in plain JAX, hot paths in Pallas kernels above)
# ---------------------------------------------------------------------------
def gcn_forward(supports, features, params, layers, parrallel_num, *, tm=None, tk=None):
    """
    supports: list of (A, norm_out, norm_in); A: (M, M) dense weighted adjacency,
              norm_*: (M, 1) = clamp(degree,1)^-1/2.
    features: (B, P, N, D)
    """
    B, P, N, D = features.shape
    M = B * P * N
    feat0 = features.reshape(M, D).astype(jnp.float32)

    W, bias = params["gcn_w"], params["gcn_b"]            # (D, D), (1, D)
    Wc, bc = params["conv_w"], params["conv_b"]            # (Cout, Cin), (Cout, 1)

    out = [feat0]
    for (A, n_out, n_in) in supports:
        # Fold the degree norms into A once per support (exact; reused `layers`
        # times) and cast the dominant HBM stream to bf16.
        A_hat = (n_in * A * n_out.reshape(1, M)).astype(jnp.bfloat16)
        f1 = gcn_layer(A_hat, feat0.astype(jnp.bfloat16), W, bias, tm=tm, tk=tk)
        out.append(f1)
        for _ in range(2, layers + 1):
            f2 = gcn_layer(A_hat, f1.astype(jnp.bfloat16), W, bias, tm=tm, tk=tk)
            out.append(f2)
            f1 = f2

    # torch.cat(out, dim=0).view(B, -1, N, D)  (raw row-major reinterpret, as PyTorch)
    # Minor HBM pass vs. the M^2 A stream; left to XLA.
    h = jnp.concatenate(out, axis=0)                       # (K*M, D)
    K = len(out)
    h = h.reshape(B, K * P, N * D)                         # (B, C_in, S) lanes = N*D
    y = conv1x1(h, Wc, bc)                                 # (B, P, N*D)
    y = y.reshape(B, P, N, D)
    # dropout(training=False) -> identity
    return y


# ---------------------------------------------------------------------------
# Plain-JAX f32 reference (mirrors the PyTorch/DGL math) for validation.
# ---------------------------------------------------------------------------
def gcn_forward_ref(supports, features, params, layers):
    B, P, N, D = features.shape
    M = B * P * N
    feat0 = features.reshape(M, D)
    W, bias = params["gcn_w"], params["gcn_b"]
    Wc, bc = params["conv_w"], params["conv_b"]

    def layer(A, f, n_out, n_in):
        return ((A @ (f * n_out)) @ W) * n_in + bias

    out = [feat0]
    for (A, n_out, n_in) in supports:
        f1 = layer(A, feat0, n_out, n_in)
        out.append(f1)
        for _ in range(2, layers + 1):
            f2 = layer(A, f1, n_out, n_in)
            out.append(f2)
            f1 = f2
    h = jnp.concatenate(out, axis=0)
    K = len(out)
    h = h.reshape(B, K * P, N * D)
    y = jnp.einsum("oc,bcs->bos", Wc, h) + bc.reshape(1, -1, 1)
    return y.reshape(B, P, N, D)


if __name__ == "__main__":
    # Small shapes consistent with the module (hid_feats must equal in_feats
    # for torch.cat(dim=0) + view to be valid, as in the original code).
    B, P, N, D = 2, 2, 32, 32        # batch, parrallel_num, num_node, in=hid_feats
    layers, support_len = 2, 2
    M = B * P * N                    # 256 graph nodes
    K = layers * support_len + 1     # concatenated feature blocks
    Cin, Cout = K * P, P

    key = jax.random.PRNGKey(0)
    k_feat, k_w, k_cw, k_cb, *k_sup = jax.random.split(key, 4 + 2 * support_len)

    features = jax.random.normal(k_feat, (B, P, N, D), dtype=jnp.float32)

    # Deterministic parameter init (shapes from __init__)
    xav = (6.0 / (D + D)) ** 0.5
    gcn_w = jax.random.uniform(k_w, (D, D), jnp.float32, -xav, xav)   # xavier_uniform
    gcn_b = jnp.zeros((1, D), jnp.float32)                            # zeros_
    cbound = (1.0 / Cin) ** 0.5
    conv_w = jax.random.uniform(k_cw, (Cout, Cin), jnp.float32, -cbound, cbound)
    conv_b = jax.random.uniform(k_cb, (Cout, 1), jnp.float32, -cbound, cbound)
    params = {"gcn_w": gcn_w, "gcn_b": gcn_b, "conv_w": conv_w, "conv_b": conv_b}

    # Synthetic support graphs: dense weighted adjacency + unweighted degrees
    supports = []
    for s in range(support_len):
        km, kw = k_sup[2 * s], k_sup[2 * s + 1]
        mask = jax.random.bernoulli(km, 0.4, (M, M)).astype(jnp.float32)  # mask[dst, src]
        wts = jax.random.uniform(kw, (M, M), jnp.float32, 0.1, 1.0)
        A = mask * wts                                                    # A[dst, src]
        out_deg = jnp.clip(mask.sum(axis=0), 1.0)                         # edges leaving src
        in_deg = jnp.clip(mask.sum(axis=1), 1.0)                          # edges entering dst
        norm_out = (out_deg ** -0.5).reshape(M, 1)
        norm_in = (in_deg ** -0.5).reshape(M, 1)
        supports.append((A, norm_out, norm_in))

    # tm=tk=128 here so the small test exercises the tiled accumulator path
    # (grid=(2,2)); production defaults to 512 tiles.
    y = gcn_forward(supports, features, params, layers, P, tm=128, tk=128)
    y = jax.block_until_ready(y)

    # Validate bf16-A Pallas path against the f32 reference.
    y_ref = gcn_forward_ref(supports, features, params, layers)
    err = float(jnp.max(jnp.abs(y - y_ref)) / (jnp.max(jnp.abs(y_ref)) + 1e-6))

    assert y.shape == (B, P, N, D) and y.dtype == jnp.float32
    assert err < 5e-2, f"numerics mismatch vs f32 reference: {err}"
    print("KERNEL_OK")
</pallas_src>

<mosaic_0001>
module attributes {stable_mosaic.version = 11 : i64} {
  func.func @_gcn_layer_kernel(%arg0: i32, %arg1: i32, %arg2: memref<128x128xbf16, #tpu.memory_space<vmem>>, %arg3: memref<128x32xbf16, #tpu.memory_space<vmem>>, %arg4: memref<32x32xf32, #tpu.memory_space<vmem>>, %arg5: memref<1x32xf32, #tpu.memory_space<vmem>>, %arg6: memref<128x32xf32, #tpu.memory_space<vmem>>, %arg7: memref<128x32xf32, #tpu.memory_space<vmem>>) attributes {dimension_semantics = [#tpu.dimension_semantics<parallel>, #tpu.dimension_semantics<arbitrary>], iteration_bounds = array<i64: 1, 1>, scalar_prefetch = 0 : i64, scratch_operands = 1 : i64, tpu.core_type = #tpu.core_type<tc>, window_params = [{transform_indices = @transform_0, window_bounds = array<i64: 128, 128>}, {transform_indices = @transform_1, window_bounds = array<i64: 128, 32>}, {pipeline_mode = #tpu.pipeline_mode<synchronous>, transform_indices = @transform_2, window_bounds = array<i64: 32, 32>}, {pipeline_mode = #tpu.pipeline_mode<synchronous>, transform_indices = @transform_3, window_bounds = array<i64: 1, 32>}, {transform_indices = @transform_4, window_bounds = array<i64: 128, 32>}]} {
    %c0_i32 = arith.constant 0 : i32
    %0 = arith.cmpi eq, %arg1, %c0_i32 : i32
    %1 = arith.extui %0 : i1 to i32
    %c0_i32_0 = arith.constant 0 : i32
    %2 = arith.cmpi ne, %1, %c0_i32_0 : i32
    scf.if %2 {
      %cst_10 = arith.constant 0.000000e+00 : f32
      %12 = vector.broadcast %cst_10 : f32 to vector<128x32xf32>
      %c0_11 = arith.constant 0 : index
      %c0_12 = arith.constant 0 : index
      %13 = vector.load %arg7[%c0_11, %c0_12] : memref<128x32xf32, #tpu.memory_space<vmem>>, vector<128x32xf32>
      tpu.vector_store %arg7[%c0_11, %c0_12], %12 {strides = array<i32>} : memref<128x32xf32, #tpu.memory_space<vmem>>, vector<128x32xf32>,
    } else {
    }
    %c0 = arith.constant 0 : index
    %c0_1 = arith.constant 0 : index
    %3 = vector.load %arg7[%c0, %c0_1] : memref<128x32xf32, #tpu.memory_space<vmem>>, vector<128x32xf32>
    %c0_2 = arith.constant 0 : index
    %c0_3 = arith.constant 0 : index
    %4 = vector.load %arg2[%c0_2, %c0_3] : memref<128x128xbf16, #tpu.memory_space<vmem>>, vector<128x128xbf16>
    %c0_4 = arith.constant 0 : index
    %c0_5 = arith.constant 0 : index
    %5 = vector.load %arg3[%c0_4, %c0_5] : memref<128x32xbf16, #tpu.memory_space<vmem>>, vector<128x32xbf16>
    %cst = arith.constant dense<0.000000e+00> : vector<128x32xf32>
    %6 = tpu.matmul %4, %5, %cst {dimension_numbers = #tpu.dot_dimension_numbers<[1], [0], [0], [1], [0, 0, 1, 1], [], []>} : vector<128x128xbf16>, vector<128x32xbf16>, vector<128x32xf32> -> vector<128x32xf32>
    %7 = arith.addf %3, %6 : vector<128x32xf32>
    %c0_6 = arith.constant 0 : index
    %c0_7 = arith.constant 0 : index
    %8 = vector.load %arg7[%c0_6, %c0_7] : memref<128x32xf32, #tpu.memory_space<vmem>>, vector<128x32xf32>
    tpu.vector_store %arg7[%c0_6, %c0_7], %7 {strides = array<i32>} : memref<128x32xf32, #tpu.memory_space<vmem>>, vector<128x32xf32>,
    %c0_i32_8 = arith.constant 0 : i32
    %9 = arith.cmpi eq, %arg1, %c0_i32_8 : i32
    %10 = arith.extui %9 : i1 to i32
    %c0_i32_9 = arith.constant 0 : i32
    %11 = arith.cmpi ne, %10, %c0_i32_9 : i32
    scf.if %11 {
      %c0_10 = arith.constant 0 : index
      %c0_11 = arith.constant 0 : index
      %12 = vector.load %arg7[%c0_10, %c0_11] : memref<128x32xf32, #tpu.memory_space<vmem>>, vector<128x32xf32>
      %c0_12 = arith.constant 0 : index
      %c0_13 = arith.constant 0 : index
      %13 = vector.load %arg4[%c0_12, %c0_13] : memref<32x32xf32, #tpu.memory_space<vmem>>, vector<32x32xf32>
      %cst_14 = arith.constant dense<0.000000e+00> : vector<128x32xf32>
      %14 = tpu.matmul %12, %13, %cst_14 {dimension_numbers = #tpu.dot_dimension_numbers<[1], [0], [0], [1], [0, 0, 1, 1], [], []>} : vector<128x32xf32>, vector<32x32xf32>, vector<128x32xf32> -> vector<128x32xf32>
      %c0_15 = arith.constant 0 : index
      %c0_16 = arith.constant 0 : index
      %15 = vector.load %arg5[%c0_15, %c0_16] : memref<1x32xf32, #tpu.memory_space<vmem>>, vector<1x32xf32>
      %16 = vector.broadcast %15 : vector<1x32xf32> to vector<128x32xf32>
      %17 = arith.addf %14, %16 : vector<128x32xf32>
      %c0_17 = arith.constant 0 : index
      %c0_18 = arith.constant 0 : index
      %18 = vector.load %arg6[%c0_17, %c0_18] : memref<128x32xf32, #tpu.memory_space<vmem>>, vector<128x32xf32>
      tpu.vector_store %arg6[%c0_17, %c0_18], %17 {strides = array<i32>} : memref<128x32xf32, #tpu.memory_space<vmem>>, vector<128x32xf32>,
    } else {
    }
    return
  }
  func.func @transform_0(%arg0: i32, %arg1: i32) -> (i32, i32) {
    %c0_i32 = arith.constant 0 : i32
    return %arg0, %arg1 : i32, i32
  }
  func.func @transform_1(%arg0: i32, %arg1: i32) -> (i32, i32) {
    %c0_i32 = arith.constant 0 : i32
    %c0_i32_0 = arith.constant 0 : i32
    return %arg1, %c0_i32 : i32, i32
  }
  func.func @transform_2(%arg0: i32, %arg1: i32) -> (i32, i32) {
    %c0_i32 = arith.constant 0 : i32
    %c0_i32_0 = arith.constant 0 : i32
    %c0_i32_1 = arith.constant 0 : i32
    return %c0_i32, %c0_i32_0 : i32, i32
  }
  func.func @transform_3(%arg0: i32, %arg1: i32) -> (i32, i32) {
    %c0_i32 = arith.constant 0 : i32
    %c0_i32_0 = arith.constant 0 : i32
    %c0_i32_1 = arith.constant 0 : i32
    return %c0_i32, %c0_i32_0 : i32, i32
  }
  func.func @transform_4(%arg0: i32, %arg1: i32) -> (i32, i32) {
    %c0_i32 = arith.constant 0 : i32
    %c0_i32_0 = arith.constant 0 : i32
    return %arg0, %c0_i32 : i32, i32
  }
}

</mosaic_0001>

<llo_original>
// kernel: tpu_custom_call.1
$region0: #{tpu_custom_call.1}
  #allocation0 [shape = 'u32[]', space=smem, size = 0x4, offset = 0x4, fixed_abs, tag = 'smem constant byte address 0x4 - core index']
  #allocation1 [shape = 'u32[144,128]{1,0:T(1,128)}', space=vmem, size = 0x12000, scoped, tag = 'internal scratch']
  #allocation2 [shape = 'f32[128,32]{1,0:T(8,128)}', space=vmem, size = 0x10000, scoped, tag = 'scratch operand']
  %s0 = inlined_call_operand.vmem [shape: bf16[128,128], index: 0, kind: input, shape index: {}]
  %s1 = inlined_call_operand.vmem [shape: bf16[128,32], index: 1, kind: input, shape index: {}]
  %s2 = inlined_call_operand.hbm [shape: f32[32,32], index: 2, kind: input, shape index: {}]
  %s3 = inlined_call_operand.vmem [shape: f32[1,32], index: 3, kind: input, shape index: {}]
  %s4 = inlined_call_operand.vmem [shape: f32[128,32], index: 4, kind: output, shape index: {}]
  %s5 = sld [smem:[#allocation0]]
  $region38: #{tpu_custom_call.1} parent=0
    _
  %s7 = ssub.s32 1, %s5
  %s8 = scalar_select 0, %s7, %s5
  $region1: #{tpu_custom_call.1} parent=0
    #allocation3 [shape = 'u8[16384]{0}', space=vmem, size = 0x4000, scoped, tag = 'input window, operand 2, single buffered']
    #allocation4 [shape = 's32[1]{0}', space=sflag, size = 0x4, scoped, tag = 'scoped memory for tpu_custom_call.1']
    %9 = vsyncpa [#allocation4], 0
    // Predicated region
    $region2: #{tpu_custom_call.1} parent=1 // pred_check
      _
    $region3: #{tpu_custom_call.1} parent=1 // pred_check_branch
      %11 = sbr.rel (0) target = $region5
    $region4: #{tpu_custom_call.1} parent=1 // pred_region
      _
    $region5: #{tpu_custom_call.1} parent=1 // pred_fallthru
      _
    // Predicated region
    $region6: #{tpu_custom_call.1} parent=1 // pred_check
      _
    $region7: #{tpu_custom_call.1} parent=1 // pred_check_branch
      %13 = sbr.rel (0) target = $region9
    $region8: #{tpu_custom_call.1} parent=1 // pred_region
      _
    $region9: #{tpu_custom_call.1} parent=1 // pred_fallthru
      _
    // Predicated region
    $region10: #{tpu_custom_call.1} parent=1 // pred_check
      _
    $region11: #{tpu_custom_call.1} parent=1 // pred_check_branch
      %15 = sbr.rel (0) target = $region13
    $region12: #{tpu_custom_call.1} parent=1 // pred_region
      %s17 = ssub.s32 512, 512
      %18 = vsyncadd [#allocation4], %s17
      %s19 = sshll.u32 [#allocation3], 4
      %s20 = int_to_ptr.vmem [resolvable:$true] %s19
      %25 = dma.hbm_to_vmem [thread:$0]  %s2, 512, %s20, [#allocation4], 128, 128, 8
    $region13: #{tpu_custom_call.1} parent=1 // pred_fallthru
      _
    // Predicated region
    $region14: #{tpu_custom_call.1} parent=1 // pred_check
      _
    $region15: #{tpu_custom_call.1} parent=1 // pred_check_branch
      %27 = sbr.rel (0) target = $region17
    $region16: #{tpu_custom_call.1} parent=1 // pred_region
      _
    $region17: #{tpu_custom_call.1} parent=1 // pred_fallthru
      _
    // Predicated region
    $region18: #{tpu_custom_call.1} parent=1 // pred_check
      _
    $region19: #{tpu_custom_call.1} parent=1 // pred_check_branch
      %29 = sbr.rel (0) target = $region21
    $region20: #{tpu_custom_call.1} parent=1 // pred_region
      %30 = dma.done [#allocation4], 512
    $region21: #{tpu_custom_call.1} parent=1 // pred_fallthru
      _
    %p32 = scmp.eq.s32.totalorder 0, 0
    // Predicated region
    $region22: #{tpu_custom_call.1} parent=1 // pred_check
      %p33 = pneg %p32
    $region23: #{tpu_custom_call.1} parent=1 // pred_check_branch
      %35 = sbr.rel (%p33) target = $region25
    $region24: #{tpu_custom_call.1} parent=1 // pred_region
      %vm36 = vcmask 261120
      %37 = vst.msk [vmem:[#allocation2] sm:$0xff] %vm36, 0.0
      %38 = vst.msk [vmem:[#allocation2 + $0x8] sm:$0xff] %vm36, 0.0
      %39 = vst.msk [vmem:[#allocation2 + $0x10] sm:$0xff] %vm36, 0.0
      %40 = vst.msk [vmem:[#allocation2 + $0x18] sm:$0xff] %vm36, 0.0
      %41 = vst.msk [vmem:[#allocation2 + $0x20] sm:$0xff] %vm36, 0.0
      %42 = vst.msk [vmem:[#allocation2 + $0x28] sm:$0xff] %vm36, 0.0
      %43 = vst.msk [vmem:[#allocation2 + $0x30] sm:$0xff] %vm36, 0.0
      %44 = vst.msk [vmem:[#allocation2 + $0x38] sm:$0xff] %vm36, 0.0
      %45 = vst.msk [vmem:[#allocation2 + $0x40] sm:$0xff] %vm36, 0.0
      %46 = vst.msk [vmem:[#allocation2 + $0x48] sm:$0xff] %vm36, 0.0
      %47 = vst.msk [vmem:[#allocation2 + $0x50] sm:$0xff] %vm36, 0.0
      %48 = vst.msk [vmem:[#allocation2 + $0x58] sm:$0xff] %vm36, 0.0
      %49 = vst.msk [vmem:[#allocation2 + $0x60] sm:$0xff] %vm36, 0.0
      %50 = vst.msk [vmem:[#allocation2 + $0x68] sm:$0xff] %vm36, 0.0
      %51 = vst.msk [vmem:[#allocation2 + $0x70] sm:$0xff] %vm36, 0.0
      %52 = vst.msk [vmem:[#allocation2 + $0x78] sm:$0xff] %vm36, 0.0
    $region25: #{tpu_custom_call.1} parent=1 // pred_fallthru
      _
    %v53 = vld [vmem:[#allocation2] sm:$0xff]
    %v54 = vld [vmem:[#allocation2 + $0x8] sm:$0xff]
    %v55 = vld [vmem:[#allocation2 + $0x10] sm:$0xff]
    %v56 = vld [vmem:[#allocation2 + $0x18] sm:$0xff]
    %v57 = vld [vmem:[#allocation2 + $0x20] sm:$0xff]
    %v58 = vld [vmem:[#allocation2 + $0x28] sm:$0xff]
    %v59 = vld [vmem:[#allocation2 + $0x30] sm:$0xff]
    %v60 = vld [vmem:[#allocation2 + $0x38] sm:$0xff]
    %v61 = vld [vmem:[#allocation2 + $0x40] sm:$0xff]
    %v62 = vld [vmem:[#allocation2 + $0x48] sm:$0xff]
    %v63 = vld [vmem:[#allocation2 + $0x50] sm:$0xff]
    %v64 = vld [vmem:[#allocation2 + $0x58] sm:$0xff]
    %v65 = vld [vmem:[#allocation2 + $0x60] sm:$0xff]
    %v66 = vld [vmem:[#allocation2 + $0x68] sm:$0xff]
    %v67 = vld [vmem:[#allocation2 + $0x70] sm:$0xff]
    %v68 = vld [vmem:[#allocation2 + $0x78] sm:$0xff]
    %v69 = vld [vmem:[%s0] sm:$0xf]
    %v70 = vld [vmem:[%s0 + $0x4] sm:$0xf]
    %v71 = vld [vmem:[%s0 + $0x8] sm:$0xf]
    %v72 = vld [vmem:[%s0 + $0xc] sm:$0xf]
    %v73 = vld [vmem:[%s0 + $0x10] sm:$0xf]
    %v74 = vld [vmem:[%s0 + $0x14] sm:$0xf]
    %v75 = vld [vmem:[%s0 + $0x18] sm:$0xf]
    %v76 = vld [vmem:[%s0 + $0x1c] sm:$0xf]
    %v77 = vld [vmem:[%s0 + $0x20] sm:$0xf]
    %v78 = vld [vmem:[%s0 + $0x24] sm:$0xf]
    %v79 = vld [vmem:[%s0 + $0x28] sm:$0xf]
    %v80 = vld [vmem:[%s0 + $0x2c] sm:$0xf]
    %v81 = vld [vmem:[%s0 + $0x30] sm:$0xf]
    %v82 = vld [vmem:[%s0 + $0x34] sm:$0xf]
    %v83 = vld [vmem:[%s0 + $0x38] sm:$0xf]
    %v84 = vld [vmem:[%s0 + $0x3c] sm:$0xf]
    %v85 = vld [vmem:[%s1] sm:$0xf]
    %v86 = vld [vmem:[%s1 + $0x4] sm:$0xf]
    %v87 = vld [vmem:[%s1 + $0x8] sm:$0xf]
    %v88 = vld [vmem:[%s1 + $0xc] sm:$0xf]
    %v89 = vld [vmem:[%s1 + $0x10] sm:$0xf]
    %v90 = vld [vmem:[%s1 + $0x14] sm:$0xf]
    %v91 = vld [vmem:[%s1 + $0x18] sm:$0xf]
    %v92 = vld [vmem:[%s1 + $0x1c] sm:$0xf]
    %v93 = vld [vmem:[%s1 + $0x20] sm:$0xf]
    %v94 = vld [vmem:[%s1 + $0x24] sm:$0xf]
    %v95 = vld [vmem:[%s1 + $0x28] sm:$0xf]
    %v96 = vld [vmem:[%s1 + $0x2c] sm:$0xf]
    %v97 = vld [vmem:[%s1 + $0x30] sm:$0xf]
    %v98 = vld [vmem:[%s1 + $0x34] sm:$0xf]
    %v99 = vld [vmem:[%s1 + $0x38] sm:$0xf]
    %v100 = vld [vmem:[%s1 + $0x3c] sm:$0xf]
    %v117 = vunpack.c.l.b16 %v69
    %v118 = vunpack.c.l.b16 %v70
    %v119 = vunpack.c.l.b16 %v71
    %v120 = vunpack.c.l.b16 %v72
    %v121 = vunpack.c.l.b16 %v73
    %v122 = vunpack.c.l.b16 %v74
    %v123 = vunpack.c.l.b16 %v75
    %v124 = vunpack.c.l.b16 %v76
    %v125 = vunpack.c.l.b16 %v77
    %v126 = vunpack.c.l.b16 %v78
    %v127 = vunpack.c.l.b16 %v79
    %v128 = vunpack.c.l.b16 %v80
    %v129 = vunpack.c.l.b16 %v81
    %v130 = vunpack.c.l.b16 %v82
    %v131 = vunpack.c.l.b16 %v83
    %v132 = vunpack.c.l.b16 %v84
    %v133 = vpack.c.b16 %v118, %v117
    %v134 = vpack.c.b16 %v120, %v119
    %v135 = vpack.c.b16 %v122, %v121
    %v136 = vpack.c.b16 %v124, %v123
    %v137 = vpack.c.b16 %v126, %v125
    %v138 = vpack.c.b16 %v128, %v127
    %v139 = vpack.c.b16 %v130, %v129
    %v140 = vpack.c.b16 %v132, %v131
    %v165 = vunpack.c.l.b16 %v85
    %v166 = vunpack.c.l.b16 %v86
    %v167 = vunpack.c.l.b16 %v87
    %v168 = vunpack.c.l.b16 %v88
    %v169 = vunpack.c.l.b16 %v89
    %v170 = vunpack.c.l.b16 %v90
    %v171 = vunpack.c.l.b16 %v91
    %v172 = vunpack.c.l.b16 %v92
    %v173 = vunpack.c.l.b16 %v93
    %v174 = vunpack.c.l.b16 %v94
    %v175 = vunpack.c.l.b16 %v95
    %v176 = vunpack.c.l.b16 %v96
    %v177 = vunpack.c.l.b16 %v97
    %v178 = vunpack.c.l.b16 %v98
    %v179 = vunpack.c.l.b16 %v99
    %v180 = vunpack.c.l.b16 %v100
    %v181 = vpack.c.b16 %v166, %v165
    %v182 = vpack.c.b16 %v168, %v167
    %v183 = vpack.c.b16 %v170, %v169
    %v184 = vpack.c.b16 %v172, %v171
    %v185 = vpack.c.b16 %v174, %v173
    %v186 = vpack.c.b16 %v176, %v175
    %v187 = vpack.c.b16 %v178, %v177
    %v188 = vpack.c.b16 %v180, %v179
    %197 = vmatprep.subr.bf16.mxu0 0
    %198 = vmatpush1.bf16.msra.mxu0 %v181
    %199 = vmatprep.subr.bf16.mxu0 0
    %200 = vmatpush1.bf16.msra.mxu0 %v182
    %201 = vmatprep.subr.bf16.mxu0 0
    %202 = vmatpush1.bf16.msra.mxu0 %v183
    %203 = vmatprep.subr.bf16.mxu0 0
    %204 = vmatpush1.bf16.msra.mxu0 %v184
    %205 = vmatprep.subr.bf16.mxu0 0
    %206 = vmatpush1.bf16.msra.mxu0 %v185
    %207 = vmatprep.subr.bf16.mxu0 0
    %208 = vmatpush1.bf16.msra.mxu0 %v186
    %209 = vmatprep.subr.bf16.mxu0 0
    %210 = vmatpush1.bf16.msra.mxu0 %v187
    %211 = vmatprep.subr.bf16.mxu0 0
    %212 = vmatpush1.bf16.msra.mxu0 %v188
    %213 = vmatprep.subr.bf16.mxu0 0
    %214 = vmatpush1.bf16.msra.mxu0 0
    %215 = vmatprep.subr.bf16.mxu0 0
    %216 = vmatpush1.bf16.msra.mxu0 0
    %217 = vmatprep.subr.bf16.mxu0 0
    %218 = vmatpush1.bf16.msra.mxu0 0
    %219 = vmatprep.subr.bf16.mxu0 0
    %220 = vmatpush1.bf16.msra.mxu0 0
    %221 = vmatprep.subr.bf16.mxu0 0
    %222 = vmatpush1.bf16.msra.mxu0 0
    %223 = vmatprep.subr.bf16.mxu0 0
    %224 = vmatpush1.bf16.msra.mxu0 0
    %225 = vmatprep.subr.bf16.mxu0 0
    %226 = vmatpush1.bf16.msra.mxu0 0
    %227 = vmatprep.subr.bf16.mxu0 0
    %228 = vmatpush1.bf16.msra.mxu0 0
    %229 = vmatprep.mubr.bf16.mxu0 0
    %230 = vmatmul.mubr.bf16.gmra.mrb[0].mxu0 %v133
    %v231 = vpop.f32.mrb[0].mxu0
    %v232 = vadd.f32 0.0, %v231
    %v233 = vpop.f32.mrb[0].mxu0
    %v234 = vpop.f32.mrb[0].mxu0
    %v235 = vadd.f32 0.0, %v234
    %v236 = vpop.f32.mrb[0].mxu0
    %237 = vmatprep.mubr.bf16.mxu0 0
    %238 = vmatmul.mubr.bf16.gmra.mrb[0].mxu0 %v134
    %v239 = vpop.f32.mrb[0].mxu0
    %v240 = vadd.f32 0.0, %v239
    %v241 = vpop.f32.mrb[0].mxu0
    %v242 = vpop.f32.mrb[0].mxu0
    %v243 = vadd.f32 0.0, %v242
    %v244 = vpop.f32.mrb[0].mxu0
    %245 = vmatprep.mubr.bf16.mxu0 0
    %246 = vmatmul.mubr.bf16.gmra.mrb[0].mxu0 %v135
    %v247 = vpop.f32.mrb[0].mxu0
    %v248 = vadd.f32 0.0, %v247
    %v249 = vpop.f32.mrb[0].mxu0
    %v250 = vpop.f32.mrb[0].mxu0
    %v251 = vadd.f32 0.0, %v250
    %v252 = vpop.f32.mrb[0].mxu0
    %253 = vmatprep.mubr.bf16.mxu0 0
    %254 = vmatmul.mubr.bf16.gmra.mrb[0].mxu0 %v136
    %v255 = vpop.f32.mrb[0].mxu0
    %v256 = vadd.f32 0.0, %v255
    %v257 = vpop.f32.mrb[0].mxu0
    %v258 = vpop.f32.mrb[0].mxu0
    %v259 = vadd.f32 0.0, %v258
    %v260 = vpop.f32.mrb[0].mxu0
    %261 = vmatprep.mubr.bf16.mxu0 0
    %262 = vmatmul.mubr.bf16.gmra.mrb[0].mxu0 %v137
    %v263 = vpop.f32.mrb[0].mxu0
    %v264 = vadd.f32 0.0, %v263
    %v265 = vpop.f32.mrb[0].mxu0
    %v266 = vpop.f32.mrb[0].mxu0
    %v267 = vadd.f32 0.0, %v266
    %v268 = vpop.f32.mrb[0].mxu0
    %269 = vmatprep.mubr.bf16.mxu0 0
    %270 = vmatmul.mubr.bf16.gmra.mrb[0].mxu0 %v138
    %v271 = vpop.f32.mrb[0].mxu0
    %v272 = vadd.f32 0.0, %v271
    %v273 = vpop.f32.mrb[0].mxu0
    %v274 = vpop.f32.mrb[0].mxu0
    %v275 = vadd.f32 0.0, %v274
    %v276 = vpop.f32.mrb[0].mxu0
    %277 = vmatprep.mubr.bf16.mxu0 0
    %278 = vmatmul.mubr.bf16.gmra.mrb[0].mxu0 %v139
    %v279 = vpop.f32.mrb[0].mxu0
    %v280 = vadd.f32 0.0, %v279
    %v281 = vpop.f32.mrb[0].mxu0
    %v282 = vpop.f32.mrb[0].mxu0
    %v283 = vadd.f32 0.0, %v282
    %v284 = vpop.f32.mrb[0].mxu0
    %285 = vmatprep.mubr.bf16.mxu0 0
    %286 = vmatmul.mubr.bf16.gmra.mrb[0].mxu0 %v140
    %v287 = vpop.f32.mrb[0].mxu0
    %v288 = vadd.f32 0.0, %v287
    %v289 = vpop.f32.mrb[0].mxu0
    %v290 = vpop.f32.mrb[0].mxu0
    %v291 = vadd.f32 0.0, %v290
    %v292 = vpop.f32.mrb[0].mxu0
    %293 = vdwg.mxu0
    %v294 = vadd.f32 %v53, %v232
    %v295 = vadd.f32 %v54, %v235
    %v296 = vadd.f32 %v55, %v240
    %v297 = vadd.f32 %v56, %v243
    %v298 = vadd.f32 %v57, %v248
    %v299 = vadd.f32 %v58, %v251
    %v300 = vadd.f32 %v59, %v256
    %v301 = vadd.f32 %v60, %v259
    %v302 = vadd.f32 %v61, %v264
    %v303 = vadd.f32 %v62, %v267
    %v304 = vadd.f32 %v63, %v272
    %v305 = vadd.f32 %v64, %v275
    %v306 = vadd.f32 %v65, %v280
    %v307 = vadd.f32 %v66, %v283
    %v308 = vadd.f32 %v67, %v288
    %v309 = vadd.f32 %v68, %v291
    %vm310 = vcmask 261120
    %311 = vst.msk [vmem:[#allocation2] sm:$0xff] %vm310, %v294
    %312 = vst.msk [vmem:[#allocation2 + $0x8] sm:$0xff] %vm310, %v295
    %313 = vst.msk [vmem:[#allocation2 + $0x10] sm:$0xff] %vm310, %v296
    %314 = vst.msk [vmem:[#allocation2 + $0x18] sm:$0xff] %vm310, %v297
    %315 = vst.msk [vmem:[#allocation2 + $0x20] sm:$0xff] %vm310, %v298
    %316 = vst.msk [vmem:[#allocation2 + $0x28] sm:$0xff] %vm310, %v299
    %317 = vst.msk [vmem:[#allocation2 + $0x30] sm:$0xff] %vm310, %v300
    %318 = vst.msk [vmem:[#allocation2 + $0x38] sm:$0xff] %vm310, %v301
    %319 = vst.msk [vmem:[#allocation2 + $0x40] sm:$0xff] %vm310, %v302
    %320 = vst.msk [vmem:[#allocation2 + $0x48] sm:$0xff] %vm310, %v303
    %321 = vst.msk [vmem:[#allocation2 + $0x50] sm:$0xff] %vm310, %v304
    %322 = vst.msk [vmem:[#allocation2 + $0x58] sm:$0xff] %vm310, %v305
    %323 = vst.msk [vmem:[#allocation2 + $0x60] sm:$0xff] %vm310, %v306
    %324 = vst.msk [vmem:[#allocation2 + $0x68] sm:$0xff] %vm310, %v307
    %325 = vst.msk [vmem:[#allocation2 + $0x70] sm:$0xff] %vm310, %v308
    %326 = vst.msk [vmem:[#allocation2 + $0x78] sm:$0xff] %vm310, %v309
    // Predicated region
    $region26: #{tpu_custom_call.1} parent=1 // pred_check
      %p327 = pneg %p32
    $region27: #{tpu_custom_call.1} parent=1 // pred_check_branch
      %329 = sbr.rel (%p327) target = $region29
    $region28: #{tpu_custom_call.1} parent=1 // pred_region
      %v330 = vld [vmem:[#allocation2] sm:$0xff]
      %v331 = vld [vmem:[#allocation2 + $0x8] sm:$0xff]
      %v332 = vld [vmem:[#allocation2 + $0x10] sm:$0xff]
      %v333 = vld [vmem:[#allocation2 + $0x18] sm:$0xff]
      %v334 = vld [vmem:[#allocation2 + $0x20] sm:$0xff]
      %v335 = vld [vmem:[#allocation2 + $0x28] sm:$0xff]
      %v336 = vld [vmem:[#allocation2 + $0x30] sm:$0xff]
      %v337 = vld [vmem:[#allocation2 + $0x38] sm:$0xff]
      %v338 = vld [vmem:[#allocation2 + $0x40] sm:$0xff]
      %v339 = vld [vmem:[#allocation2 + $0x48] sm:$0xff]
      %v340 = vld [vmem:[#allocation2 + $0x50] sm:$0xff]
      %v341 = vld [vmem:[#allocation2 + $0x58] sm:$0xff]
      %v342 = vld [vmem:[#allocation2 + $0x60] sm:$0xff]
      %v343 = vld [vmem:[#allocation2 + $0x68] sm:$0xff]
      %v344 = vld [vmem:[#allocation2 + $0x70] sm:$0xff]
      %v345 = vld [vmem:[#allocation2 + $0x78] sm:$0xff]
      %v346 = vld [vmem:[#allocation3] sm:$0xff]
      %v347 = vld [vmem:[#allocation3 + $0x8] sm:$0xff]
      %v348 = vld [vmem:[#allocation3 + $0x10] sm:$0xff]
      %v349 = vld [vmem:[#allocation3 + $0x18] sm:$0xff]
      %v350 = vld [vmem:[%s3] sm:$0x1]
      %v352 = vlaneseq
      %v353 = vshrl.u32 %v352, 7
      %v354 = vsub.s32 0, %v353
      %v355 = vrot.slane %v350, %v354
      %v358 = vsel %vm310, %v330, 0
      %v361 = vsel %vm310, %v331, 0
      %v364 = vsel %vm310, %v332, 0
      %v367 = vsel %vm310, %v333, 0
      %v370 = vsel %vm310, %v334, 0
      %v373 = vsel %vm310, %v335, 0
      %v376 = vsel %vm310, %v336, 0
      %v379 = vsel %vm310, %v337, 0
      %v382 = vsel %vm310, %v338, 0
      %v385 = vsel %vm310, %v339, 0
      %v388 = vsel %vm310, %v340, 0
      %v391 = vsel %vm310, %v341, 0
      %v394 = vsel %vm310, %v342, 0
      %v397 = vsel %vm310, %v343, 0
      %v400 = vsel %vm310, %v344, 0
      %v403 = vsel %vm310, %v345, 0
      %405 = vmatprep.subr.mxu0 0.0
      %406 = vmatpush1.msra.mxu0 %v346
      %407 = vmatprep.subr.mxu0 0.0
      %408 = vmatpush1.msra.mxu0 %v347
      %409 = vmatprep.subr.mxu0 0.0
      %410 = vmatpush1.msra.mxu0 %v348
      %411 = vmatprep.subr.mxu0 0.0
      %412 = vmatpush1.msra.mxu0 %v349
      %413 = vmatprep.subr.mxu0 0.0
      %414 = vmatpush1.msra.mxu0 0.0
      %415 = vmatprep.subr.mxu0 0.0
      %416 = vmatpush1.msra.mxu0 0.0
      %417 = vmatprep.subr.mxu0 0.0
      %418 = vmatpush1.msra.mxu0 0.0
      %419 = vmatprep.subr.mxu0 0.0
      %420 = vmatpush1.msra.mxu0 0.0
      %421 = vmatprep.subr.mxu0 0.0
      %422 = vmatpush1.msra.mxu0 0.0
      %423 = vmatprep.subr.mxu0 0.0
      %424 = vmatpush1.msra.mxu0 0.0
      %425 = vmatprep.subr.mxu0 0.0
      %426 = vmatpush1.msra.mxu0 0.0
      %427 = vmatprep.subr.mxu0 0.0
      %428 = vmatpush1.msra.mxu0 0.0
      %429 = vmatprep.subr.mxu0 0.0
      %430 = vmatpush1.msra.mxu0 0.0
      %431 = vmatprep.subr.mxu0 0.0
      %432 = vmatpush1.msra.mxu0 0.0
      %433 = vmatprep.subr.mxu0 0.0
      %434 = vmatpush1.msra.mxu0 0.0
      %435 = vmatprep.subr.mxu0 0.0
      %436 = vmatpush1.msra.mxu0 0.0
      %437 = vmatprep.subr.mxu0 0.0
      %438 = vmatpush1.msra.mxu0 0.0
      %439 = vmatprep.subr.mxu0 0.0
      %440 = vmatpush1.msra.mxu0 0.0
      %441 = vmatprep.subr.mxu0 0.0
      %442 = vmatpush1.msra.mxu0 0.0
      %443 = vmatprep.subr.mxu0 0.0
      %444 = vmatpush1.msra.mxu0 0.0
      %445 = vmatprep.subr.mxu0 0.0
      %446 = vmatpush1.msra.mxu0 0.0
      %447 = vmatprep.subr.mxu0 0.0
      %448 = vmatpush1.msra.mxu0 0.0
      %449 = vmatprep.subr.mxu0 0.0
      %450 = vmatpush1.msra.mxu0 0.0
      %451 = vmatprep.subr.mxu0 0.0
      %452 = vmatpush1.msra.mxu0 0.0
      %453 = vmatprep.subr.mxu0 0.0
      %454 = vmatpush1.msra.mxu0 0.0
      %455 = vmatprep.subr.mxu0 0.0
      %456 = vmatpush1.msra.mxu0 0.0
      %457 = vmatprep.subr.mxu0 0.0
      %458 = vmatpush1.msra.mxu0 0.0
      %459 = vmatprep.subr.mxu0 0.0
      %460 = vmatpush1.msra.mxu0 0.0
      %461 = vmatprep.subr.mxu0 0.0
      %462 = vmatpush1.msra.mxu0 0.0
      %463 = vmatprep.subr.mxu0 0.0
      %464 = vmatpush1.msra.mxu0 0.0
      %465 = vmatprep.subr.mxu0 0.0
      %466 = vmatpush1.msra.mxu0 0.0
      %467 = vmatprep.subr.mxu0 0.0
      %468 = vmatpush1.msra.mxu0 0.0
      %469 = vmatprep.mubr.f32.mxu0 0.0
      %470 = vmatmul.mubr.f32.gmra.mrb[0].mxu0 %v358
      %v471 = vpop.f32.mrb[0].mxu0
      %v472 = vadd.f32 %v355, %v471
      %v473 = vpop.f32.mrb[0].mxu0
      %474 = vmatprep.mubr.f32.mxu0 0.0
      %475 = vmatmul.mubr.f32.gmra.mrb[0].mxu0 %v361
      %v476 = vpop.f32.mrb[0].mxu0
      %v477 = vadd.f32 %v355, %v476
      %v478 = vpop.f32.mrb[0].mxu0
      %479 = vmatprep.mubr.f32.mxu0 0.0
      %480 = vmatmul.mubr.f32.gmra.mrb[0].mxu0 %v364
      %v481 = vpop.f32.mrb[0].mxu0
      %v482 = vadd.f32 %v355, %v481
      %v483 = vpop.f32.mrb[0].mxu0
      %484 = vmatprep.mubr.f32.mxu0 0.0
      %485 = vmatmul.mubr.f32.gmra.mrb[0].mxu0 %v367
      %v486 = vpop.f32.mrb[0].mxu0
      %v487 = vadd.f32 %v355, %v486
      %v488 = vpop.f32.mrb[0].mxu0
      %489 = vmatprep.mubr.f32.mxu0 0.0
      %490 = vmatmul.mubr.f32.gmra.mrb[0].mxu0 %v370
      %v491 = vpop.f32.mrb[0].mxu0
      %v492 = vadd.f32 %v355, %v491
      %v493 = vpop.f32.mrb[0].mxu0
      %494 = vmatprep.mubr.f32.mxu0 0.0
      %495 = vmatmul.mubr.f32.gmra.mrb[0].mxu0 %v373
      %v496 = vpop.f32.mrb[0].mxu0
      %v497 = vadd.f32 %v355, %v496
      %v498 = vpop.f32.mrb[0].mxu0
      %499 = vmatprep.mubr.f32.mxu0 0.0
      %500 = vmatmul.mubr.f32.gmra.mrb[0].mxu0 %v376
      %v501 = vpop.f32.mrb[0].mxu0
      %v502 = vadd.f32 %v355, %v501
      %v503 = vpop.f32.mrb[0].mxu0
      %504 = vmatprep.mubr.f32.mxu0 0.0
      %505 = vmatmul.mubr.f32.gmra.mrb[0].mxu0 %v379
      %v506 = vpop.f32.mrb[0].mxu0
      %v507 = vadd.f32 %v355, %v506
      %v508 = vpop.f32.mrb[0].mxu0
      %509 = vmatprep.mubr.f32.mxu0 0.0
      %510 = vmatmul.mubr.f32.gmra.mrb[0].mxu0 %v382
      %v511 = vpop.f32.mrb[0].mxu0
      %v512 = vadd.f32 %v355, %v511
      %v513 = vpop.f32.mrb[0].mxu0
      %514 = vmatprep.mubr.f32.mxu0 0.0
      %515 = vmatmul.mubr.f32.gmra.mrb[0].mxu0 %v385
      %v516 = vpop.f32.mrb[0].mxu0
      %v517 = vadd.f32 %v355, %v516
      %v518 = vpop.f32.mrb[0].mxu0
      %519 = vmatprep.mubr.f32.mxu0 0.0
      %520 = vmatmul.mubr.f32.gmra.mrb[0].mxu0 %v388
      %v521 = vpop.f32.mrb[0].mxu0
      %v522 = vadd.f32 %v355, %v521
      %v523 = vpop.f32.mrb[0].mxu0
      %524 = vmatprep.mubr.f32.mxu0 0.0
      %525 = vmatmul.mubr.f32.gmra.mrb[0].mxu0 %v391
      %v526 = vpop.f32.mrb[0].mxu0
      %v527 = vadd.f32 %v355, %v526
      %v528 = vpop.f32.mrb[0].mxu0
      %529 = vmatprep.mubr.f32.mxu0 0.0
      %530 = vmatmul.mubr.f32.gmra.mrb[0].mxu0 %v394
      %v531 = vpop.f32.mrb[0].mxu0
      %v532 = vadd.f32 %v355, %v531
      %v533 = vpop.f32.mrb[0].mxu0
      %534 = vmatprep.mubr.f32.mxu0 0.0
      %535 = vmatmul.mubr.f32.gmra.mrb[0].mxu0 %v397
      %v536 = vpop.f32.mrb[0].mxu0
      %v537 = vadd.f32 %v355, %v536
      %v538 = vpop.f32.mrb[0].mxu0
      %539 = vmatprep.mubr.f32.mxu0 0.0
      %540 = vmatmul.mubr.f32.gmra.mrb[0].mxu0 %v400
      %v541 = vpop.f32.mrb[0].mxu0
      %v542 = vadd.f32 %v355, %v541
      %v543 = vpop.f32.mrb[0].mxu0
      %544 = vmatprep.mubr.f32.mxu0 0.0
      %545 = vmatmul.mubr.f32.gmra.mrb[0].mxu0 %v403
      %v546 = vpop.f32.mrb[0].mxu0
      %v547 = vadd.f32 %v355, %v546
      %v548 = vpop.f32.mrb[0].mxu0
      %549 = vdwg.mxu0
      %550 = vst.msk [vmem:[%s4] sm:$0xff] %vm310, %v472
      %551 = vst.msk [vmem:[%s4 + $0x8] sm:$0xff] %vm310, %v477
      %552 = vst.msk [vmem:[%s4 + $0x10] sm:$0xff] %vm310, %v482
      %553 = vst.msk [vmem:[%s4 + $0x18] sm:$0xff] %vm310, %v487
      %554 = vst.msk [vmem:[%s4 + $0x20] sm:$0xff] %vm310, %v492
      %555 = vst.msk [vmem:[%s4 + $0x28] sm:$0xff] %vm310, %v497
      %556 = vst.msk [vmem:[%s4 + $0x30] sm:$0xff] %vm310, %v502
      %557 = vst.msk [vmem:[%s4 + $0x38] sm:$0xff] %vm310, %v507
      %558 = vst.msk [vmem:[%s4 + $0x40] sm:$0xff] %vm310, %v512
      %559 = vst.msk [vmem:[%s4 + $0x48] sm:$0xff] %vm310, %v517
      %560 = vst.msk [vmem:[%s4 + $0x50] sm:$0xff] %vm310, %v522
      %561 = vst.msk [vmem:[%s4 + $0x58] sm:$0xff] %vm310, %v527
      %562 = vst.msk [vmem:[%s4 + $0x60] sm:$0xff] %vm310, %v532
      %563 = vst.msk [vmem:[%s4 + $0x68] sm:$0xff] %vm310, %v537
      %564 = vst.msk [vmem:[%s4 + $0x70] sm:$0xff] %vm310, %v542
      %565 = vst.msk [vmem:[%s4 + $0x78] sm:$0xff] %vm310, %v547
    $region29: #{tpu_custom_call.1} parent=1 // pred_fallthru
      _
    // Predicated region
    $region30: #{tpu_custom_call.1} parent=1 // pred_check
      _
    $region31: #{tpu_custom_call.1} parent=1 // pred_check_branch
      %567 = sbr.rel (0) target = $region33
    $region32: #{tpu_custom_call.1} parent=1 // pred_region
      _
    $region33: #{tpu_custom_call.1} parent=1 // pred_fallthru
      _
    // Predicated region
    $region34: #{tpu_custom_call.1} parent=1 // pred_check
      _
    $region35: #{tpu_custom_call.1} parent=1 // pred_check_branch
      %569 = sbr.rel (0) target = $region37
    $region36: #{tpu_custom_call.1} parent=1 // pred_region
      _
    $region37: #{tpu_custom_call.1} parent=1 // pred_fallthru
      _
    %570 = vsyncpa [#allocation4], 1

</llo_original>
